<compile_context>
chip_gen: v7x
topology: tpu7x:2x2x1
jax: 0.10.0
libtpu: 0.0.40
codegen_flags: <defaults>
</compile_context>

<pallas_src>
import jax
import jax.numpy as jnp
from jax.experimental import pallas as pl
from jax.experimental.pallas import tpu as pltpu


def _generator_mlp_kernel(x_ref, w1_ref, b1_ref, w2_ref, b2_ref,
                          w3_ref, b3_ref, o_ref):
    # Linear(128 -> 256) + ReLU   (K padded from 100; extra rows are zero)
    h1 = jnp.dot(x_ref[...], w1_ref[...], preferred_element_type=jnp.float32)
    h1 = jnp.maximum(h1 + b1_ref[...], 0.0)
    # Linear(256 -> 256) + ReLU   (bf16 operands, f32 accumulation)
    h2 = jnp.dot(h1.astype(jnp.bfloat16), w2_ref[...],
                 preferred_element_type=jnp.float32)
    h2 = jnp.maximum(h2 + b2_ref[...], 0.0)
    # Linear(256 -> 896) + Tanh   (N padded from 784; extra cols are zero)
    h3 = jnp.dot(h2.astype(jnp.bfloat16), w3_ref[...],
                 preferred_element_type=jnp.float32)
    o_ref[...] = jnp.tanh(h3 + b3_ref[...]).astype(o_ref.dtype)


def _round_up(n, m):
    return ((n + m - 1) // m) * m


def generator_forward(x, params, *, batch_tile=256):
    """Pallas TPU implementation of the Generator MLP forward pass.

    x: (B, 100) float32
    params: dict with w1 (100,256), b1 (1,256), w2 (256,256), b2 (1,256),
            w3 (256,784), b3 (1,784)  (all float32)
    returns: (B, 784) float32
    """
    B, D_in = x.shape
    assert D_in == 100
    K1 = 128            # layer-1 contraction, padded 100 -> 128
    H = 256             # hidden width (matches the 256x256 MXU tile)
    D_out = 784
    D_out_pad = 896     # 7 * 128 -> lane-dense output stores

    # Batch tiling: multiple of 8 sublanes; pad B to a whole number of tiles.
    bt = min(batch_tile, _round_up(B, 8))
    B_pad = _round_up(B, bt)

    # One-time wrapper-side padding + bf16 cast (zero padding is exact).
    x_p = jnp.zeros((B_pad, K1), jnp.bfloat16).at[:B, :D_in].set(
        x.astype(jnp.bfloat16))
    w1 = jnp.zeros((K1, H), jnp.bfloat16).at[:D_in, :].set(
        params["w1"].astype(jnp.bfloat16))
    b1 = params["b1"].astype(jnp.float32)
    w2 = params["w2"].astype(jnp.bfloat16)
    b2 = params["b2"].astype(jnp.float32)
    w3 = jnp.zeros((H, D_out_pad), jnp.bfloat16).at[:, :D_out].set(
        params["w3"].astype(jnp.bfloat16))
    b3 = jnp.zeros((1, D_out_pad), jnp.float32).at[:, :D_out].set(
        params["b3"].astype(jnp.float32))

    grid = (B_pad // bt,)

    # Weights/biases are small (< 1 MiB total in bf16) and stay resident in
    # VMEM (constant index_map); only the batch dimension is tiled.
    full = lambda shape: pl.BlockSpec(shape, lambda i: (0, 0))

    cost = pl.CostEstimate(
        flops=2 * B_pad * (K1 * H + H * H + H * D_out_pad),
        transcendentals=B_pad * D_out_pad,
        bytes_accessed=(x_p.size * 2 + w1.size * 2 + w2.size * 2 + w3.size * 2
                        + b1.size * 4 + b2.size * 4 + b3.size * 4
                        + B_pad * D_out_pad * 4),
    )

    out = pl.pallas_call(
        _generator_mlp_kernel,
        out_shape=jax.ShapeDtypeStruct((B_pad, D_out_pad), jnp.float32),
        grid_spec=pltpu.PrefetchScalarGridSpec(
            num_scalar_prefetch=0,
            grid=grid,
            in_specs=[
                pl.BlockSpec((bt, K1), lambda i: (i, 0)),   # x tile
                full(w1.shape), full(b1.shape),
                full(w2.shape), full(b2.shape),
                full(w3.shape), full(b3.shape),
            ],
            out_specs=pl.BlockSpec((bt, D_out_pad), lambda i: (i, 0)),
        ),
        compiler_params=pltpu.CompilerParams(
            dimension_semantics=("parallel",)),
        cost_estimate=cost,
    )(x_p, w1, b1, w2, b2, w3, b3)

    return out[:B, :D_out]


def init_generator_params(key):
    """Deterministic init mimicking nn.Linear default (uniform +/- 1/sqrt(fan_in))."""
    dims = [(100, 256), (256, 256), (256, 784)]
    params = {}
    for idx, (fan_in, fan_out) in enumerate(dims, start=1):
        key, kw, kb = jax.random.split(key, 3)
        bound = 1.0 / jnp.sqrt(jnp.float32(fan_in))
        params[f"w{idx}"] = jax.random.uniform(
            kw, (fan_in, fan_out), jnp.float32, -bound, bound)
        params[f"b{idx}"] = jax.random.uniform(
            kb, (1, fan_out), jnp.float32, -bound, bound)
    return params


def _reference_forward(x, p):
    h1 = jnp.maximum(x @ p["w1"] + p["b1"], 0.0)
    h2 = jnp.maximum(h1 @ p["w2"] + p["b2"], 0.0)
    return jnp.tanh(h2 @ p["w3"] + p["b3"])


if __name__ == "__main__":
    key = jax.random.PRNGKey(0)
    key, kx = jax.random.split(key)

    # Small deterministic example: batch of 16 latent vectors of size 100.
    B = 16
    x = jax.random.normal(kx, (B, 100), jnp.float32)   # latent noise z

    params = init_generator_params(key)

    out = generator_forward(x, params)
    out = jax.block_until_ready(out)

    ref = _reference_forward(x, params)   # f32 reference
    assert out.shape == (B, 784)
    # bf16 operands with f32 accumulation -> relaxed tolerance vs f32 reference.
    assert jnp.allclose(out, ref, atol=3e-2, rtol=3e-2), "mismatch vs JAX reference"

    print("KERNEL_OK")
</pallas_src>

<mosaic_0001>
module attributes {stable_mosaic.version = 11 : i64} {
  func.func @_generator_mlp_kernel(%arg0: i32, %arg1: memref<16x128xbf16, #tpu.memory_space<vmem>>, %arg2: memref<128x256xbf16, #tpu.memory_space<vmem>>, %arg3: memref<1x256xf32, #tpu.memory_space<vmem>>, %arg4: memref<256x256xbf16, #tpu.memory_space<vmem>>, %arg5: memref<1x256xf32, #tpu.memory_space<vmem>>, %arg6: memref<256x896xbf16, #tpu.memory_space<vmem>>, %arg7: memref<1x896xf32, #tpu.memory_space<vmem>>, %arg8: memref<16x896xf32, #tpu.memory_space<vmem>>) attributes {dimension_semantics = [#tpu.dimension_semantics<parallel>], iteration_bounds = array<i64: 1>, scalar_prefetch = 0 : i64, scratch_operands = 0 : i64, tpu.core_type = #tpu.core_type<tc>, window_params = [{transform_indices = @transform_0, window_bounds = array<i64: 16, 128>}, {pipeline_mode = #tpu.pipeline_mode<synchronous>, transform_indices = @transform_1, window_bounds = array<i64: 128, 256>}, {pipeline_mode = #tpu.pipeline_mode<synchronous>, transform_indices = @transform_2, window_bounds = array<i64: 1, 256>}, {pipeline_mode = #tpu.pipeline_mode<synchronous>, transform_indices = @transform_3, window_bounds = array<i64: 256, 256>}, {pipeline_mode = #tpu.pipeline_mode<synchronous>, transform_indices = @transform_4, window_bounds = array<i64: 1, 256>}, {pipeline_mode = #tpu.pipeline_mode<synchronous>, transform_indices = @transform_5, window_bounds = array<i64: 256, 896>}, {pipeline_mode = #tpu.pipeline_mode<synchronous>, transform_indices = @transform_6, window_bounds = array<i64: 1, 896>}, {transform_indices = @transform_7, window_bounds = array<i64: 16, 896>}]} {
    %c0 = arith.constant 0 : index
    %c0_0 = arith.constant 0 : index
    %0 = vector.load %arg1[%c0, %c0_0] : memref<16x128xbf16, #tpu.memory_space<vmem>>, vector<16x128xbf16>
    %c0_1 = arith.constant 0 : index
    %c0_2 = arith.constant 0 : index
    %1 = vector.load %arg2[%c0_1, %c0_2] : memref<128x256xbf16, #tpu.memory_space<vmem>>, vector<128x256xbf16>
    %cst = arith.constant dense<0.000000e+00> : vector<16x256xf32>
    %2 = tpu.matmul %0, %1, %cst {dimension_numbers = #tpu.dot_dimension_numbers<[1], [0], [0], [1], [0, 0, 1, 1], [], []>} : vector<16x128xbf16>, vector<128x256xbf16>, vector<16x256xf32> -> vector<16x256xf32>
    %c0_3 = arith.constant 0 : index
    %c0_4 = arith.constant 0 : index
    %3 = vector.load %arg3[%c0_3, %c0_4] : memref<1x256xf32, #tpu.memory_space<vmem>>, vector<1x256xf32>
    %4 = vector.broadcast %3 : vector<1x256xf32> to vector<16x256xf32>
    %5 = arith.addf %2, %4 : vector<16x256xf32>
    %cst_5 = arith.constant 0.000000e+00 : f32
    %6 = vector.broadcast %cst_5 : f32 to vector<16x256xf32>
    %7 = arith.maximumf %5, %6 : vector<16x256xf32>
    %8 = arith.truncf %7 : vector<16x256xf32> to vector<16x256xbf16>
    %c0_6 = arith.constant 0 : index
    %c0_7 = arith.constant 0 : index
    %9 = vector.load %arg4[%c0_6, %c0_7] : memref<256x256xbf16, #tpu.memory_space<vmem>>, vector<256x256xbf16>
    %cst_8 = arith.constant dense<0.000000e+00> : vector<16x256xf32>
    %10 = tpu.matmul %8, %9, %cst_8 {dimension_numbers = #tpu.dot_dimension_numbers<[1], [0], [0], [1], [0, 0, 1, 1], [], []>} : vector<16x256xbf16>, vector<256x256xbf16>, vector<16x256xf32> -> vector<16x256xf32>
    %c0_9 = arith.constant 0 : index
    %c0_10 = arith.constant 0 : index
    %11 = vector.load %arg5[%c0_9, %c0_10] : memref<1x256xf32, #tpu.memory_space<vmem>>, vector<1x256xf32>
    %12 = vector.broadcast %11 : vector<1x256xf32> to vector<16x256xf32>
    %13 = arith.addf %10, %12 : vector<16x256xf32>
    %cst_11 = arith.constant 0.000000e+00 : f32
    %14 = vector.broadcast %cst_11 : f32 to vector<16x256xf32>
    %15 = arith.maximumf %13, %14 : vector<16x256xf32>
    %16 = arith.truncf %15 : vector<16x256xf32> to vector<16x256xbf16>
    %c0_12 = arith.constant 0 : index
    %c0_13 = arith.constant 0 : index
    %17 = vector.load %arg6[%c0_12, %c0_13] : memref<256x896xbf16, #tpu.memory_space<vmem>>, vector<256x896xbf16>
    %cst_14 = arith.constant dense<0.000000e+00> : vector<16x896xf32>
    %18 = tpu.matmul %16, %17, %cst_14 {dimension_numbers = #tpu.dot_dimension_numbers<[1], [0], [0], [1], [0, 0, 1, 1], [], []>} : vector<16x256xbf16>, vector<256x896xbf16>, vector<16x896xf32> -> vector<16x896xf32>
    %c0_15 = arith.constant 0 : index
    %c0_16 = arith.constant 0 : index
    %19 = vector.load %arg7[%c0_15, %c0_16] : memref<1x896xf32, #tpu.memory_space<vmem>>, vector<1x896xf32>
    %20 = vector.broadcast %19 : vector<1x896xf32> to vector<16x896xf32>
    %21 = arith.addf %18, %20 : vector<16x896xf32>
    %22 = math.tanh %21 : vector<16x896xf32>
    %c0_17 = arith.constant 0 : index
    %c0_18 = arith.constant 0 : index
    %23 = vector.load %arg8[%c0_17, %c0_18] : memref<16x896xf32, #tpu.memory_space<vmem>>, vector<16x896xf32>
    tpu.vector_store %arg8[%c0_17, %c0_18], %22 {strides = array<i32>} : memref<16x896xf32, #tpu.memory_space<vmem>>, vector<16x896xf32>,
    return
  }
  func.func @transform_0(%arg0: i32) -> (i32, i32) {
    %c0_i32 = arith.constant 0 : i32
    %c0_i32_0 = arith.constant 0 : i32
    return %arg0, %c0_i32 : i32, i32
  }
  func.func @transform_1(%arg0: i32) -> (i32, i32) {
    %c0_i32 = arith.constant 0 : i32
    %c0_i32_0 = arith.constant 0 : i32
    %c0_i32_1 = arith.constant 0 : i32
    return %c0_i32, %c0_i32_0 : i32, i32
  }
  func.func @transform_2(%arg0: i32) -> (i32, i32) {
    %c0_i32 = arith.constant 0 : i32
    %c0_i32_0 = arith.constant 0 : i32
    %c0_i32_1 = arith.constant 0 : i32
    return %c0_i32, %c0_i32_0 : i32, i32
  }
  func.func @transform_3(%arg0: i32) -> (i32, i32) {
    %c0_i32 = arith.constant 0 : i32
    %c0_i32_0 = arith.constant 0 : i32
    %c0_i32_1 = arith.constant 0 : i32
    return %c0_i32, %c0_i32_0 : i32, i32
  }
  func.func @transform_4(%arg0: i32) -> (i32, i32) {
    %c0_i32 = arith.constant 0 : i32
    %c0_i32_0 = arith.constant 0 : i32
    %c0_i32_1 = arith.constant 0 : i32
    return %c0_i32, %c0_i32_0 : i32, i32
  }
  func.func @transform_5(%arg0: i32) -> (i32, i32) {
    %c0_i32 = arith.constant 0 : i32
    %c0_i32_0 = arith.constant 0 : i32
    %c0_i32_1 = arith.constant 0 : i32
    return %c0_i32, %c0_i32_0 : i32, i32
  }
  func.func @transform_6(%arg0: i32) -> (i32, i32) {
    %c0_i32 = arith.constant 0 : i32
    %c0_i32_0 = arith.constant 0 : i32
    %c0_i32_1 = arith.constant 0 : i32
    return %c0_i32, %c0_i32_0 : i32, i32
  }
  func.func @transform_7(%arg0: i32) -> (i32, i32) {
    %c0_i32 = arith.constant 0 : i32
    %c0_i32_0 = arith.constant 0 : i32
    return %arg0, %c0_i32 : i32, i32
  }
}

</mosaic_0001>

<llo_original>
// kernel: tpu_custom_call.1
$region0: #{tpu_custom_call.1}
  #allocation0 [shape = 'u32[]', space=smem, size = 0x4, offset = 0x4, fixed_abs, tag = 'smem constant byte address 0x4 - core index']
  #allocation1 [shape = 'u32[144,128]{1,0:T(1,128)}', space=vmem, size = 0x12000, scoped, tag = 'internal scratch']
  %s0 = inlined_call_operand.hbm [shape: bf16[16,128], index: 0, kind: input, shape index: {}]
  %s1 = inlined_call_operand.hbm [shape: bf16[128,256], index: 1, kind: input, shape index: {}]
  %s2 = inlined_call_operand.vmem [shape: f32[1,256], index: 2, kind: input, shape index: {}]
  %s3 = inlined_call_operand.hbm [shape: bf16[256,256], index: 3, kind: input, shape index: {}]
  %s4 = inlined_call_operand.vmem [shape: f32[1,256], index: 4, kind: input, shape index: {}]
  %s5 = inlined_call_operand.hbm [shape: bf16[256,896], index: 5, kind: input, shape index: {}]
  %s6 = inlined_call_operand.vmem [shape: f32[1,896], index: 6, kind: input, shape index: {}]
  %s7 = inlined_call_operand.hbm [shape: f32[16,896], index: 7, kind: output, shape index: {}]
  %s8 = sld [smem:[#allocation0]]
  $region54: #{tpu_custom_call.1} parent=0
    _
  %s10 = ssub.s32 1, %s8
  %s11 = scalar_select 0, %s10, %s8
  $region1: #{tpu_custom_call.1} parent=0
    #allocation2 [shape = 'u8[4096]{0}', space=vmem, size = 0x1000, scoped, tag = 'input window, operand 0, single buffered']
    #allocation3 [shape = 's32[1]{0}', space=sflag, size = 0x4, scoped, tag = 'scoped memory for tpu_custom_call.1']
    #allocation4 [shape = 's32[1]{0}', space=sflag, size = 0x4, scoped, tag = 'scoped memory for tpu_custom_call.1']
    #allocation5 [shape = 'u8[65536]{0}', space=vmem, size = 0x10000, scoped, tag = 'input window, operand 1, single buffered']
    #allocation6 [shape = 's32[1]{0}', space=sflag, size = 0x4, scoped, tag = 'scoped memory for tpu_custom_call.1']
    #allocation7 [shape = 'u8[131072]{0}', space=vmem, size = 0x20000, scoped, tag = 'input window, operand 3, single buffered']
    #allocation8 [shape = 'u8[458752]{0}', space=vmem, size = 0x70000, scoped, tag = 'input window, operand 5, single buffered']
    #allocation9 [shape = 's32[1]{0}', space=sflag, size = 0x4, scoped, tag = 'scoped memory for tpu_custom_call.1']
    #allocation10 [shape = 'u8[57344]{0}', space=vmem, size = 0xe000, scoped, tag = 'output window, operand 0, single buffered']
    %12 = vsyncpa [#allocation3], 0
    %13 = vsyncpa [#allocation6], 0
    %14 = vsyncpa [#allocation9], 0
    %15 = vsyncpa [#allocation4], 0
    // Predicated region
    $region2: #{tpu_custom_call.1} parent=1 // pred_check
      _
    $region3: #{tpu_custom_call.1} parent=1 // pred_check_branch
      %17 = sbr.rel (0) target = $region5
    $region4: #{tpu_custom_call.1} parent=1 // pred_region
      %s19 = ssub.s32 128, 128
      %20 = vsyncadd [#allocation3], %s19
      %s21 = sshll.u32 [#allocation2], 4
      %s22 = int_to_ptr.vmem [resolvable:$true] %s21
      %27 = dma.hbm_to_vmem [thread:$0]  %s0, 128, %s22, [#allocation3], 64, 64, 4
    $region5: #{tpu_custom_call.1} parent=1 // pred_fallthru
      _
    // Predicated region
    $region6: #{tpu_custom_call.1} parent=1 // pred_check
      _
    $region7: #{tpu_custom_call.1} parent=1 // pred_check_branch
      %29 = sbr.rel (0) target = $region9
    $region8: #{tpu_custom_call.1} parent=1 // pred_region
      %s31 = ssub.s32 2048, 2048
      %32 = vsyncadd [#allocation6], %s31
      %s33 = sshll.u32 [#allocation5], 4
      %s34 = int_to_ptr.vmem [resolvable:$true] %s33
      %39 = dma.hbm_to_vmem [thread:$0]  %s1, 2048, %s34, [#allocation6], 128, 128, 8
    $region9: #{tpu_custom_call.1} parent=1 // pred_fallthru
      _
    // Predicated region
    $region10: #{tpu_custom_call.1} parent=1 // pred_check
      _
    $region11: #{tpu_custom_call.1} parent=1 // pred_check_branch
      %41 = sbr.rel (0) target = $region13
    $region12: #{tpu_custom_call.1} parent=1 // pred_region
      _
    $region13: #{tpu_custom_call.1} parent=1 // pred_fallthru
      _
    // Predicated region
    $region14: #{tpu_custom_call.1} parent=1 // pred_check
      _
    $region15: #{tpu_custom_call.1} parent=1 // pred_check_branch
      %43 = sbr.rel (0) target = $region17
    $region16: #{tpu_custom_call.1} parent=1 // pred_region
      %s45 = ssub.s32 4096, 4096
      %46 = vsyncadd [#allocation6], %s45
      %s47 = sshll.u32 [#allocation7], 4
      %s48 = int_to_ptr.vmem [resolvable:$true] %s47
      %53 = dma.hbm_to_vmem [thread:$0]  %s3, 4096, %s48, [#allocation6], 128, 128, 8
    $region17: #{tpu_custom_call.1} parent=1 // pred_fallthru
      _
    // Predicated region
    $region18: #{tpu_custom_call.1} parent=1 // pred_check
      _
    $region19: #{tpu_custom_call.1} parent=1 // pred_check_branch
      %55 = sbr.rel (0) target = $region21
    $region20: #{tpu_custom_call.1} parent=1 // pred_region
      _
    $region21: #{tpu_custom_call.1} parent=1 // pred_fallthru
      _
    // Predicated region
    $region22: #{tpu_custom_call.1} parent=1 // pred_check
      _
    $region23: #{tpu_custom_call.1} parent=1 // pred_check_branch
      %57 = sbr.rel (0) target = $region25
    $region24: #{tpu_custom_call.1} parent=1 // pred_region
      %s59 = ssub.s32 14336, 14336
      %60 = vsyncadd [#allocation9], %s59
      %s61 = sshll.u32 [#allocation8], 4
      %s62 = int_to_ptr.vmem [resolvable:$true] %s61
      %67 = dma.hbm_to_vmem [thread:$0]  %s5, 14336, %s62, [#allocation9], 448, 448, 28
    $region25: #{tpu_custom_call.1} parent=1 // pred_fallthru
      _
    // Predicated region
    $region26: #{tpu_custom_call.1} parent=1 // pred_check
      _
    $region27: #{tpu_custom_call.1} parent=1 // pred_check_branch
      %69 = sbr.rel (0) target = $region29
    $region28: #{tpu_custom_call.1} parent=1 // pred_region
      _
    $region29: #{tpu_custom_call.1} parent=1 // pred_fallthru
      _
    // Predicated region
    $region30: #{tpu_custom_call.1} parent=1 // pred_check
      _
    $region31: #{tpu_custom_call.1} parent=1 // pred_check_branch
      %71 = sbr.rel (0) target = $region33
    $region32: #{tpu_custom_call.1} parent=1 // pred_region
      %72 = dma.done [#allocation3], 128
    $region33: #{tpu_custom_call.1} parent=1 // pred_fallthru
      _
    // Predicated region
    $region34: #{tpu_custom_call.1} parent=1 // pred_check
      _
    $region35: #{tpu_custom_call.1} parent=1 // pred_check_branch
      %74 = sbr.rel (0) target = $region37
    $region36: #{tpu_custom_call.1} parent=1 // pred_region
      %75 = dma.done [#allocation6], 2048
    $region37: #{tpu_custom_call.1} parent=1 // pred_fallthru
      _
    // Predicated region
    $region38: #{tpu_custom_call.1} parent=1 // pred_check
      _
    $region39: #{tpu_custom_call.1} parent=1 // pred_check_branch
      %77 = sbr.rel (0) target = $region41
    $region40: #{tpu_custom_call.1} parent=1 // pred_region
      %78 = dma.done [#allocation6], 4096
    $region41: #{tpu_custom_call.1} parent=1 // pred_fallthru
      _
    // Predicated region
    $region42: #{tpu_custom_call.1} parent=1 // pred_check
      _
    $region43: #{tpu_custom_call.1} parent=1 // pred_check_branch
      %80 = sbr.rel (0) target = $region45
    $region44: #{tpu_custom_call.1} parent=1 // pred_region
      %81 = dma.done [#allocation9], 14336
    $region45: #{tpu_custom_call.1} parent=1 // pred_fallthru
      _
    %v83 = vld [vmem:[#allocation2] sm:$0xf]
    %v84 = vld [vmem:[#allocation2 + $0x4] sm:$0xf]
    %v85 = vld [vmem:[#allocation5] sm:$0xff]
    %v86 = vld [vmem:[#allocation5 + $0x8] sm:$0xff]
    %v87 = vld [vmem:[#allocation5 + $0x10] sm:$0xff]
    %v88 = vld [vmem:[#allocation5 + $0x18] sm:$0xff]
    %v89 = vld [vmem:[#allocation5 + $0x20] sm:$0xff]
    %v90 = vld [vmem:[#allocation5 + $0x28] sm:$0xff]
    %v91 = vld [vmem:[#allocation5 + $0x30] sm:$0xff]
    %v92 = vld [vmem:[#allocation5 + $0x38] sm:$0xff]
    %v93 = vld [vmem:[#allocation5 + $0x40] sm:$0xff]
    %v94 = vld [vmem:[#allocation5 + $0x48] sm:$0xff]
    %v95 = vld [vmem:[#allocation5 + $0x50] sm:$0xff]
    %v96 = vld [vmem:[#allocation5 + $0x58] sm:$0xff]
    %v97 = vld [vmem:[#allocation5 + $0x60] sm:$0xff]
    %v98 = vld [vmem:[#allocation5 + $0x68] sm:$0xff]
    %v99 = vld [vmem:[#allocation5 + $0x70] sm:$0xff]
    %v100 = vld [vmem:[#allocation5 + $0x78] sm:$0xff]
    %v101 = vld [vmem:[%s2] sm:$0x3]
    %v103 = vlaneseq
    %v104 = vshrl.u32 %v103, 7
    %v105 = vsub.s32 0, %v104
    %v106 = vrot.slane %v101, %v105
    %v107 = vlaneseq
    %v108 = vshrl.u32 %v107, 7
    %v109 = vsub.s32 1, %v108
    %v110 = vrot.slane %v101, %v109
    %v115 = vunpack.c.l.b16 %v83
    %v116 = vunpack.c.l.b16 %v84
    %v117 = vpack.c.b16 %v116, %v115
    %v135 = vunpack.c.l.b16 %v85
    %v136 = vunpack.c.h.b16 %v85
    %v137 = vunpack.c.l.b16 %v86
    %v138 = vunpack.c.h.b16 %v86
    %v139 = vunpack.c.l.b16 %v87
    %v140 = vunpack.c.h.b16 %v87
    %v141 = vunpack.c.l.b16 %v88
    %v142 = vunpack.c.h.b16 %v88
    %v143 = vunpack.c.l.b16 %v89
    %v144 = vunpack.c.h.b16 %v89
    %v145 = vunpack.c.l.b16 %v90
    %v146 = vunpack.c.h.b16 %v90
    %v147 = vunpack.c.l.b16 %v91
    %v148 = vunpack.c.h.b16 %v91
    %v149 = vunpack.c.l.b16 %v92
    %v150 = vunpack.c.h.b16 %v92
    %v151 = vunpack.c.l.b16 %v93
    %v152 = vunpack.c.h.b16 %v93
    %v153 = vunpack.c.l.b16 %v94
    %v154 = vunpack.c.h.b16 %v94
    %v155 = vunpack.c.l.b16 %v95
    %v156 = vunpack.c.h.b16 %v95
    %v157 = vunpack.c.l.b16 %v96
    %v158 = vunpack.c.h.b16 %v96
    %v159 = vunpack.c.l.b16 %v97
    %v160 = vunpack.c.h.b16 %v97
    %v161 = vunpack.c.l.b16 %v98
    %v162 = vunpack.c.h.b16 %v98
    %v163 = vunpack.c.l.b16 %v99
    %v164 = vunpack.c.h.b16 %v99
    %v165 = vunpack.c.l.b16 %v100
    %v166 = vunpack.c.h.b16 %v100
    %v167 = vpack.c.b16 %v137, %v135
    %v168 = vpack.c.b16 %v138, %v136
    %v169 = vpack.c.b16 %v141, %v139
    %v170 = vpack.c.b16 %v142, %v140
    %v171 = vpack.c.b16 %v145, %v143
    %v172 = vpack.c.b16 %v146, %v144
    %v173 = vpack.c.b16 %v149, %v147
    %v174 = vpack.c.b16 %v150, %v148
    %v175 = vpack.c.b16 %v153, %v151
    %v176 = vpack.c.b16 %v154, %v152
    %v177 = vpack.c.b16 %v157, %v155
    %v178 = vpack.c.b16 %v158, %v156
    %v179 = vpack.c.b16 %v161, %v159
    %v180 = vpack.c.b16 %v162, %v160
    %v181 = vpack.c.b16 %v165, %v163
    %v182 = vpack.c.b16 %v166, %v164
    %199 = vmatprep.subr.bf16.mxu0 %v168
    %200 = vmatpush1.bf16.msra.mxu0 %v167
    %201 = vmatprep.subr.bf16.mxu0 %v170
    %202 = vmatpush1.bf16.msra.mxu0 %v169
    %203 = vmatprep.subr.bf16.mxu0 %v172
    %204 = vmatpush1.bf16.msra.mxu0 %v171
    %205 = vmatprep.subr.bf16.mxu0 %v174
    %206 = vmatpush1.bf16.msra.mxu0 %v173
    %207 = vmatprep.subr.bf16.mxu0 %v176
    %208 = vmatpush1.bf16.msra.mxu0 %v175
    %209 = vmatprep.subr.bf16.mxu0 %v178
    %210 = vmatpush1.bf16.msra.mxu0 %v177
    %211 = vmatprep.subr.bf16.mxu0 %v180
    %212 = vmatpush1.bf16.msra.mxu0 %v179
    %213 = vmatprep.subr.bf16.mxu0 %v182
    %214 = vmatpush1.bf16.msra.mxu0 %v181
    %215 = vmatprep.subr.bf16.mxu0 0
    %216 = vmatpush1.bf16.msra.mxu0 0
    %217 = vmatprep.subr.bf16.mxu0 0
    %218 = vmatpush1.bf16.msra.mxu0 0
    %219 = vmatprep.subr.bf16.mxu0 0
    %220 = vmatpush1.bf16.msra.mxu0 0
    %221 = vmatprep.subr.bf16.mxu0 0
    %222 = vmatpush1.bf16.msra.mxu0 0
    %223 = vmatprep.subr.bf16.mxu0 0
    %224 = vmatpush1.bf16.msra.mxu0 0
    %225 = vmatprep.subr.bf16.mxu0 0
    %226 = vmatpush1.bf16.msra.mxu0 0
    %227 = vmatprep.subr.bf16.mxu0 0
    %228 = vmatpush1.bf16.msra.mxu0 0
    %229 = vmatprep.subr.bf16.mxu0 0
    %230 = vmatpush1.bf16.msra.mxu0 0
    %231 = vmatprep.mubr.bf16.mxu0 0
    %232 = vmatmul.mubr.bf16.gmra.mrb[0].mxu0 %v117
    %v233 = vpop.f32.mrb[0].mxu0
    %v234 = vadd.f32 %v106, %v233
    %v235 = vpop.f32.mrb[0].mxu0
    %v236 = vadd.f32 %v110, %v235
    %v237 = vpop.f32.mrb[0].mxu0
    %v238 = vadd.f32 %v106, %v237
    %v239 = vpop.f32.mrb[0].mxu0
    %v240 = vadd.f32 %v110, %v239
    %241 = vdwg.mxu0
    %v242 = vmax.f32 %v234, 0.0
    %v243 = vmax.f32 %v236, 0.0
    %v244 = vmax.f32 %v238, 0.0
    %v245 = vmax.f32 %v240, 0.0
    %v246 = vpack.c.bf16 %v244, %v242
    %v247 = vpack.c.bf16 %v245, %v243
    %v248 = vld [vmem:[#allocation7] sm:$0xff]
    %v249 = vld [vmem:[#allocation7 + $0x8] sm:$0xff]
    %v250 = vld [vmem:[#allocation7 + $0x10] sm:$0xff]
    %v251 = vld [vmem:[#allocation7 + $0x18] sm:$0xff]
    %v252 = vld [vmem:[#allocation7 + $0x20] sm:$0xff]
    %v253 = vld [vmem:[#allocation7 + $0x28] sm:$0xff]
    %v254 = vld [vmem:[#allocation7 + $0x30] sm:$0xff]
    %v255 = vld [vmem:[#allocation7 + $0x38] sm:$0xff]
    %v256 = vld [vmem:[#allocation7 + $0x40] sm:$0xff]
    %v257 = vld [vmem:[#allocation7 + $0x48] sm:$0xff]
    %v258 = vld [vmem:[#allocation7 + $0x50] sm:$0xff]
    %v259 = vld [vmem:[#allocation7 + $0x58] sm:$0xff]
    %v260 = vld [vmem:[#allocation7 + $0x60] sm:$0xff]
    %v261 = vld [vmem:[#allocation7 + $0x68] sm:$0xff]
    %v262 = vld [vmem:[#allocation7 + $0x70] sm:$0xff]
    %v263 = vld [vmem:[#allocation7 + $0x78] sm:$0xff]
    %v264 = vld [vmem:[#allocation7 + $0x80] sm:$0xff]
    %v265 = vld [vmem:[#allocation7 + $0x88] sm:$0xff]
    %v266 = vld [vmem:[#allocation7 + $0x90] sm:$0xff]
    %v267 = vld [vmem:[#allocation7 + $0x98] sm:$0xff]
    %v268 = vld [vmem:[#allocation7 + $0xa0] sm:$0xff]
    %v269 = vld [vmem:[#allocation7 + $0xa8] sm:$0xff]
    %v270 = vld [vmem:[#allocation7 + $0xb0] sm:$0xff]
    %v271 = vld [vmem:[#allocation7 + $0xb8] sm:$0xff]
    %v272 = vld [vmem:[#allocation7 + $0xc0] sm:$0xff]
    %v273 = vld [vmem:[#allocation7 + $0xc8] sm:$0xff]
    %v274 = vld [vmem:[#allocation7 + $0xd0] sm:$0xff]
    %v275 = vld [vmem:[#allocation7 + $0xd8] sm:$0xff]
    %v276 = vld [vmem:[#allocation7 + $0xe0] sm:$0xff]
    %v277 = vld [vmem:[#allocation7 + $0xe8] sm:$0xff]
    %v278 = vld [vmem:[#allocation7 + $0xf0] sm:$0xff]
    %v279 = vld [vmem:[#allocation7 + $0xf8] sm:$0xff]
    %v280 = vld [vmem:[%s4] sm:$0x3]
    %v282 = vlaneseq
    %v283 = vshrl.u32 %v282, 7
    %v284 = vsub.s32 0, %v283
    %v285 = vrot.slane %v280, %v284
    %v286 = vlaneseq
    %v287 = vshrl.u32 %v286, 7
    %v288 = vsub.s32 1, %v287
    %v289 = vrot.slane %v280, %v288
    %v324 = vunpack.c.l.b16 %v248
    %v325 = vunpack.c.h.b16 %v248
    %v326 = vunpack.c.l.b16 %v249
    %v327 = vunpack.c.h.b16 %v249
    %v328 = vunpack.c.l.b16 %v250
    %v329 = vunpack.c.h.b16 %v250
    %v330 = vunpack.c.l.b16 %v251
    %v331 = vunpack.c.h.b16 %v251
    %v332 = vunpack.c.l.b16 %v252
    %v333 = vunpack.c.h.b16 %v252
    %v334 = vunpack.c.l.b16 %v253
    %v335 = vunpack.c.h.b16 %v253
    %v336 = vunpack.c.l.b16 %v254
    %v337 = vunpack.c.h.b16 %v254
    %v338 = vunpack.c.l.b16 %v255
    %v339 = vunpack.c.h.b16 %v255
    %v340 = vunpack.c.l.b16 %v256
    %v341 = vunpack.c.h.b16 %v256
    %v342 = vunpack.c.l.b16 %v257
    %v343 = vunpack.c.h.b16 %v257
    %v344 = vunpack.c.l.b16 %v258
    %v345 = vunpack.c.h.b16 %v258
    %v346 = vunpack.c.l.b16 %v259
    %v347 = vunpack.c.h.b16 %v259
    %v348 = vunpack.c.l.b16 %v260
    %v349 = vunpack.c.h.b16 %v260
    %v350 = vunpack.c.l.b16 %v261
    %v351 = vunpack.c.h.b16 %v261
    %v352 = vunpack.c.l.b16 %v262
    %v353 = vunpack.c.h.b16 %v262
    %v354 = vunpack.c.l.b16 %v263
    %v355 = vunpack.c.h.b16 %v263
    %v356 = vunpack.c.l.b16 %v264
    %v357 = vunpack.c.h.b16 %v264
    %v358 = vunpack.c.l.b16 %v265
    %v359 = vunpack.c.h.b16 %v265
    %v360 = vunpack.c.l.b16 %v266
    %v361 = vunpack.c.h.b16 %v266
    %v362 = vunpack.c.l.b16 %v267
    %v363 = vunpack.c.h.b16 %v267
    %v364 = vunpack.c.l.b16 %v268
    %v365 = vunpack.c.h.b16 %v268
    %v366 = vunpack.c.l.b16 %v269
    %v367 = vunpack.c.h.b16 %v269
    %v368 = vunpack.c.l.b16 %v270
    %v369 = vunpack.c.h.b16 %v270
    %v370 = vunpack.c.l.b16 %v271
    %v371 = vunpack.c.h.b16 %v271
    %v372 = vunpack.c.l.b16 %v272
    %v373 = vunpack.c.h.b16 %v272
    %v374 = vunpack.c.l.b16 %v273
    %v375 = vunpack.c.h.b16 %v273
    %v376 = vunpack.c.l.b16 %v274
    %v377 = vunpack.c.h.b16 %v274
    %v378 = vunpack.c.l.b16 %v275
    %v379 = vunpack.c.h.b16 %v275
    %v380 = vunpack.c.l.b16 %v276
    %v381 = vunpack.c.h.b16 %v276
    %v382 = vunpack.c.l.b16 %v277
    %v383 = vunpack.c.h.b16 %v277
    %v384 = vunpack.c.l.b16 %v278
    %v385 = vunpack.c.h.b16 %v278
    %v386 = vunpack.c.l.b16 %v279
    %v387 = vunpack.c.h.b16 %v279
    %v388 = vpack.c.b16 %v326, %v324
    %v389 = vpack.c.b16 %v327, %v325
    %v390 = vpack.c.b16 %v330, %v328
    %v391 = vpack.c.b16 %v331, %v329
    %v392 = vpack.c.b16 %v334, %v332
    %v393 = vpack.c.b16 %v335, %v333
    %v394 = vpack.c.b16 %v338, %v336
    %v395 = vpack.c.b16 %v339, %v337
    %v396 = vpack.c.b16 %v342, %v340
    %v397 = vpack.c.b16 %v343, %v341
    %v398 = vpack.c.b16 %v346, %v344
    %v399 = vpack.c.b16 %v347, %v345
    %v400 = vpack.c.b16 %v350, %v348
    %v401 = vpack.c.b16 %v351, %v349
    %v402 = vpack.c.b16 %v354, %v352
    %v403 = vpack.c.b16 %v355, %v353
    %v404 = vpack.c.b16 %v358, %v356
    %v405 = vpack.c.b16 %v359, %v357
    %v406 = vpack.c.b16 %v362, %v360
    %v407 = vpack.c.b16 %v363, %v361
    %v408 = vpack.c.b16 %v366, %v364
    %v409 = vpack.c.b16 %v367, %v365
    %v410 = vpack.c.b16 %v370, %v368
    %v411 = vpack.c.b16 %v371, %v369
    %v412 = vpack.c.b16 %v374, %v372
    %v413 = vpack.c.b16 %v375, %v373
    %v414 = vpack.c.b16 %v378, %v376
    %v415 = vpack.c.b16 %v379, %v377
    %v416 = vpack.c.b16 %v382, %v380
    %v417 = vpack.c.b16 %v383, %v381
    %v418 = vpack.c.b16 %v386, %v384
    %v419 = vpack.c.b16 %v387, %v385
    %452 = vmatprep.subr.bf16.mxu0 %v389
    %453 = vmatpush1.bf16.msra.mxu0 %v388
    %454 = vmatprep.subr.bf16.mxu0 %v391
    %455 = vmatpush1.bf16.msra.mxu0 %v390
    %456 = vmatprep.subr.bf16.mxu0 %v393
    %457 = vmatpush1.bf16.msra.mxu0 %v392
    %458 = vmatprep.subr.bf16.mxu0 %v395
    %459 = vmatpush1.bf16.msra.mxu0 %v394
    %460 = vmatprep.subr.bf16.mxu0 %v397
    %461 = vmatpush1.bf16.msra.mxu0 %v396
    %462 = vmatprep.subr.bf16.mxu0 %v399
    %463 = vmatpush1.bf16.msra.mxu0 %v398
    %464 = vmatprep.subr.bf16.mxu0 %v401
    %465 = vmatpush1.bf16.msra.mxu0 %v400
    %466 = vmatprep.subr.bf16.mxu0 %v403
    %467 = vmatpush1.bf16.msra.mxu0 %v402
    %468 = vmatprep.subr.bf16.mxu0 %v405
    %469 = vmatpush1.bf16.msra.mxu0 %v404
    %470 = vmatprep.subr.bf16.mxu0 %v407
    %471 = vmatpush1.bf16.msra.mxu0 %v406
    %472 = vmatprep.subr.bf16.mxu0 %v409
    %473 = vmatpush1.bf16.msra.mxu0 %v408
    %474 = vmatprep.subr.bf16.mxu0 %v411
    %475 = vmatpush1.bf16.msra.mxu0 %v410
    %476 = vmatprep.subr.bf16.mxu0 %v413
    %477 = vmatpush1.bf16.msra.mxu0 %v412
    %478 = vmatprep.subr.bf16.mxu0 %v415
    %479 = vmatpush1.bf16.msra.mxu0 %v414
    %480 = vmatprep.subr.bf16.mxu0 %v417
    %481 = vmatpush1.bf16.msra.mxu0 %v416
    %482 = vmatprep.subr.bf16.mxu0 %v419
    %483 = vmatpush1.bf16.msra.mxu0 %v418
    %484 = vmatprep.mubr.bf16.mxu0 %v247
    %485 = vmatmul.mubr.bf16.gmra.mrb[0].mxu0 %v246
    %v486 = vpop.f32.mrb[0].mxu0
    %v487 = vadd.f32 %v285, %v486
    %v488 = vpop.f32.mrb[0].mxu0
    %v489 = vadd.f32 %v289, %v488
    %v490 = vpop.f32.mrb[0].mxu0
    %v491 = vadd.f32 %v285, %v490
    %v492 = vpop.f32.mrb[0].mxu0
    %v493 = vadd.f32 %v289, %v492
    %494 = vdwg.mxu0
    %v495 = vmax.f32 %v487, 0.0
    %v496 = vmax.f32 %v489, 0.0
    %v497 = vmax.f32 %v491, 0.0
    %v498 = vmax.f32 %v493, 0.0
    %v499 = vpack.c.bf16 %v497, %v495
    %v500 = vpack.c.bf16 %v498, %v496
    %v501 = vld [vmem:[#allocation8] sm:$0xff]
    %v502 = vld [vmem:[#allocation8 + $0x8] sm:$0xff]
    %v503 = vld [vmem:[#allocation8 + $0x10] sm:$0xff]
    %v504 = vld [vmem:[#allocation8 + $0x18] sm:$0xf]
    %v505 = vld [vmem:[#allocation8 + $0x1c] sm:$0xff]
    %v506 = vld [vmem:[#allocation8 + $0x24] sm:$0xff]
    %v507 = vld [vmem:[#allocation8 + $0x2c] sm:$0xff]
    %v508 = vld [vmem:[#allocation8 + $0x34] sm:$0xf]
    %v509 = vld [vmem:[#allocation8 + $0x38] sm:$0xff]
    %v510 = vld [vmem:[#allocation8 + $0x40] sm:$0xff]
    %v511 = vld [vmem:[#allocation8 + $0x48] sm:$0xff]
    %v512 = vld [vmem:[#allocation8 + $0x50] sm:$0xf]
    %v513 = vld [vmem:[#allocation8 + $0x54] sm:$0xff]
    %v514 = vld [vmem:[#allocation8 + $0x5c] sm:$0xff]
    %v515 = vld [vmem:[#allocation8 + $0x64] sm:$0xff]
    %v516 = vld [vmem:[#allocation8 + $0x6c] sm:$0xf]
    %v517 = vld [vmem:[#allocation8 + $0x70] sm:$0xff]
    %v518 = vld [vmem:[#allocation8 + $0x78] sm:$0xff]
    %v519 = vld [vmem:[#allocation8 + $0x80] sm:$0xff]
    %v520 = vld [vmem:[#allocation8 + $0x88] sm:$0xf]
    %v521 = vld [vmem:[#allocation8 + $0x8c] sm:$0xff]
    %v522 = vld [vmem:[#allocation8 + $0x94] sm:$0xff]
    %v523 = vld [vmem:[#allocation8 + $0x9c] sm:$0xff]
    %v524 = vld [vmem:[#allocation8 + $0xa4] sm:$0xf]
    %v525 = vld [vmem:[#allocation8 + $0xa8] sm:$0xff]
    %v526 = vld [vmem:[#allocation8 + $0xb0] sm:$0xff]
    %v527 = vld [vmem:[#allocation8 + $0xb8] sm:$0xff]
    %v528 = vld [vmem:[#allocation8 + $0xc0] sm:$0xf]
    %v529 = vld [vmem:[#allocation8 + $0xc4] sm:$0xff]
    %v530 = vld [vmem:[#allocation8 + $0xcc] sm:$0xff]
    %v531 = vld [vmem:[#allocation8 + $0xd4] sm:$0xff]
    %v532 = vld [vmem:[#allocation8 + $0xdc] sm:$0xf]
    %v533 = vld [vmem:[#allocation8 + $0xe0] sm:$0xff]
    %v534 = vld [vmem:[#allocation8 + $0xe8] sm:$0xff]
    %v535 = vld [vmem:[#allocation8 + $0xf0] sm:$0xff]
    %v536 = vld [vmem:[#allocation8 + $0xf8] sm:$0xf]
    %v537 = vld [vmem:[#allocation8 + $0xfc] sm:$0xff]
    %v538 = vld [vmem:[#allocation8 + $0x104] sm:$0xff]
    %v539 = vld [vmem:[#allocation8 + $0x10c] sm:$0xff]
    %v540 = vld [vmem:[#allocation8 + $0x114] sm:$0xf]
    %v541 = vld [vmem:[#allocation8 + $0x118] sm:$0xff]
    %v542 = vld [vmem:[#allocation8 + $0x120] sm:$0xff]
    %v543 = vld [vmem:[#allocation8 + $0x128] sm:$0xff]
    %v544 = vld [vmem:[#allocation8 + $0x130] sm:$0xf]
    %v545 = vld [vmem:[#allocation8 + $0x134] sm:$0xff]
    %v546 = vld [vmem:[#allocation8 + $0x13c] sm:$0xff]
    %v547 = vld [vmem:[#allocation8 + $0x144] sm:$0xff]
    %v548 = vld [vmem:[#allocation8 + $0x14c] sm:$0xf]
    %v549 = vld [vmem:[#allocation8 + $0x150] sm:$0xff]
    %v550 = vld [vmem:[#allocation8 + $0x158] sm:$0xff]
    %v551 = vld [vmem:[#allocation8 + $0x160] sm:$0xff]
    %v552 = vld [vmem:[#allocation8 + $0x168] sm:$0xf]
    %v553 = vld [vmem:[#allocation8 + $0x16c] sm:$0xff]
    %v554 = vld [vmem:[#allocation8 + $0x174] sm:$0xff]
    %v555 = vld [vmem:[#allocation8 + $0x17c] sm:$0xff]
    %v556 = vld [vmem:[#allocation8 + $0x184] sm:$0xf]
    %v557 = vld [vmem:[#allocation8 + $0x188] sm:$0xff]
    %v558 = vld [vmem:[#allocation8 + $0x190] sm:$0xff]
    %v559 = vld [vmem:[#allocation8 + $0x198] sm:$0xff]
    %v560 = vld [vmem:[#allocation8 + $0x1a0] sm:$0xf]
    %v561 = vld [vmem:[#allocation8 + $0x1a4] sm:$0xff]
    %v562 = vld [vmem:[#allocation8 + $0x1ac] sm:$0xff]
    %v563 = vld [vmem:[#allocation8 + $0x1b4] sm:$0xff]
    %v564 = vld [vmem:[#allocation8 + $0x1bc] sm:$0xf]
    %v565 = vld [vmem:[#allocation8 + $0x1c0] sm:$0xff]
    %v566 = vld [vmem:[#allocation8 + $0x1c8] sm:$0xff]
    %v567 = vld [vmem:[#allocation8 + $0x1d0] sm:$0xff]
    %v568 = vld [vmem:[#allocation8 + $0x1d8] sm:$0xf]
    %v569 = vld [vmem:[#allocation8 + $0x1dc] sm:$0xff]
    %v570 = vld [vmem:[#allocation8 + $0x1e4] sm:$0xff]
    %v571 = vld [vmem:[#allocation8 + $0x1ec] sm:$0xff]
    %v572 = vld [vmem:[#allocation8 + $0x1f4] sm:$0xf]
    %v573 = vld [vmem:[#allocation8 + $0x1f8] sm:$0xff]
    %v574 = vld [vmem:[#allocation8 + $0x200] sm:$0xff]
    %v575 = vld [vmem:[#allocation8 + $0x208] sm:$0xff]
    %v576 = vld [vmem:[#allocation8 + $0x210] sm:$0xf]
    %v577 = vld [vmem:[#allocation8 + $0x214] sm:$0xff]
    %v578 = vld [vmem:[#allocation8 + $0x21c] sm:$0xff]
    %v579 = vld [vmem:[#allocation8 + $0x224] sm:$0xff]
    %v580 = vld [vmem:[#allocation8 + $0x22c] sm:$0xf]
    %v581 = vld [vmem:[#allocation8 + $0x230] sm:$0xff]
    %v582 = vld [vmem:[#allocation8 + $0x238] sm:$0xff]
    %v583 = vld [vmem:[#allocation8 + $0x240] sm:$0xff]
    %v584 = vld [vmem:[#allocation8 + $0x248] sm:$0xf]
    %v585 = vld [vmem:[#allocation8 + $0x24c] sm:$0xff]
    %v586 = vld [vmem:[#allocation8 + $0x254] sm:$0xff]
    %v587 = vld [vmem:[#allocation8 + $0x25c] sm:$0xff]
    %v588 = vld [vmem:[#allocation8 + $0x264] sm:$0xf]
    %v589 = vld [vmem:[#allocation8 + $0x268] sm:$0xff]
    %v590 = vld [vmem:[#allocation8 + $0x270] sm:$0xff]
    %v591 = vld [vmem:[#allocation8 + $0x278] sm:$0xff]
    %v592 = vld [vmem:[#allocation8 + $0x280] sm:$0xf]
    %v593 = vld [vmem:[#allocation8 + $0x284] sm:$0xff]
    %v594 = vld [vmem:[#allocation8 + $0x28c] sm:$0xff]
    %v595 = vld [vmem:[#allocation8 + $0x294] sm:$0xff]
    %v596 = vld [vmem:[#allocation8 + $0x29c] sm:$0xf]
    %v597 = vld [vmem:[#allocation8 + $0x2a0] sm:$0xff]
    %v598 = vld [vmem:[#allocation8 + $0x2a8] sm:$0xff]
    %v599 = vld [vmem:[#allocation8 + $0x2b0] sm:$0xff]
    %v600 = vld [vmem:[#allocation8 + $0x2b8] sm:$0xf]
    %v601 = vld [vmem:[#allocation8 + $0x2bc] sm:$0xff]
    %v602 = vld [vmem:[#allocation8 + $0x2c4] sm:$0xff]
    %v603 = vld [vmem:[#allocation8 + $0x2cc] sm:$0xff]
    %v604 = vld [vmem:[#allocation8 + $0x2d4] sm:$0xf]
    %v605 = vld [vmem:[#allocation8 + $0x2d8] sm:$0xff]
    %v606 = vld [vmem:[#allocation8 + $0x2e0] sm:$0xff]
    %v607 = vld [vmem:[#allocation8 + $0x2e8] sm:$0xff]
    %v608 = vld [vmem:[#allocation8 + $0x2f0] sm:$0xf]
    %v609 = vld [vmem:[#allocation8 + $0x2f4] sm:$0xff]
    %v610 = vld [vmem:[#allocation8 + $0x2fc] sm:$0xff]
    %v611 = vld [vmem:[#allocation8 + $0x304] sm:$0xff]
    %v612 = vld [vmem:[#allocation8 + $0x30c] sm:$0xf]
    %v613 = vld [vmem:[#allocation8 + $0x310] sm:$0xff]
    %v614 = vld [vmem:[#allocation8 + $0x318] sm:$0xff]
    %v615 = vld [vmem:[#allocation8 + $0x320] sm:$0xff]
    %v616 = vld [vmem:[#allocation8 + $0x328] sm:$0xf]
    %v617 = vld [vmem:[#allocation8 + $0x32c] sm:$0xff]
    %v618 = vld [vmem:[#allocation8 + $0x334] sm:$0xff]
    %v619 = vld [vmem:[#allocation8 + $0x33c] sm:$0xff]
    %v620 = vld [vmem:[#allocation8 + $0x344] sm:$0xf]
    %v621 = vld [vmem:[#allocation8 + $0x348] sm:$0xff]
    %v622 = vld [vmem:[#allocation8 + $0x350] sm:$0xff]
    %v623 = vld [vmem:[#allocation8 + $0x358] sm:$0xff]
    %v624 = vld [vmem:[#allocation8 + $0x360] sm:$0xf]
    %v625 = vld [vmem:[#allocation8 + $0x364] sm:$0xff]
    %v626 = vld [vmem:[#allocation8 + $0x36c] sm:$0xff]
    %v627 = vld [vmem:[#allocation8 + $0x374] sm:$0xff]
    %v628 = vld [vmem:[#allocation8 + $0x37c] sm:$0xf]
    %v629 = vld [vmem:[%s6] sm:$0xff]
    %v631 = vlaneseq
    %v632 = vshrl.u32 %v631, 7
    %v633 = vsub.s32 0, %v632
    %v634 = vrot.slane %v629, %v633
    %v635 = vlaneseq
    %v636 = vshrl.u32 %v635, 7
    %v637 = vsub.s32 1, %v636
    %v638 = vrot.slane %v629, %v637
    %v639 = vlaneseq
    %v640 = vshrl.u32 %v639, 7
    %v641 = vsub.s32 2, %v640
    %v642 = vrot.slane %v629, %v641
    %v643 = vlaneseq
    %v644 = vshrl.u32 %v643, 7
    %v645 = vsub.s32 3, %v644
    %v646 = vrot.slane %v629, %v645
    %v647 = vlaneseq
    %v648 = vshrl.u32 %v647, 7
    %v649 = vsub.s32 4, %v648
    %v650 = vrot.slane %v629, %v649
    %v651 = vlaneseq
    %v652 = vshrl.u32 %v651, 7
    %v653 = vsub.s32 5, %v652
    %v654 = vrot.slane %v629, %v653
    %v655 = vlaneseq
    %v656 = vshrl.u32 %v655, 7
    %v657 = vsub.s32 6, %v656
    %v658 = vrot.slane %v629, %v657
    %v794 = vunpack.c.l.b16 %v501
    %v795 = vunpack.c.h.b16 %v501
    %v796 = vunpack.c.l.b16 %v502
    %v797 = vunpack.c.h.b16 %v502
    %v798 = vunpack.c.l.b16 %v503
    %v799 = vunpack.c.h.b16 %v503
    %v800 = vunpack.c.l.b16 %v504
    %v801 = vunpack.c.l.b16 %v505
    %v802 = vunpack.c.h.b16 %v505
    %v803 = vunpack.c.l.b16 %v506
    %v804 = vunpack.c.h.b16 %v506
    %v805 = vunpack.c.l.b16 %v507
    %v806 = vunpack.c.h.b16 %v507
    %v807 = vunpack.c.l.b16 %v508
    %v808 = vunpack.c.l.b16 %v509
    %v809 = vunpack.c.h.b16 %v509
    %v810 = vunpack.c.l.b16 %v510
    %v811 = vunpack.c.h.b16 %v510
    %v812 = vunpack.c.l.b16 %v511
    %v813 = vunpack.c.h.b16 %v511
    %v814 = vunpack.c.l.b16 %v512
    %v815 = vunpack.c.l.b16 %v513
    %v816 = vunpack.c.h.b16 %v513
    %v817 = vunpack.c.l.b16 %v514
    %v818 = vunpack.c.h.b16 %v514
    %v819 = vunpack.c.l.b16 %v515
    %v820 = vunpack.c.h.b16 %v515
    %v821 = vunpack.c.l.b16 %v516
    %v822 = vunpack.c.l.b16 %v517
    %v823 = vunpack.c.h.b16 %v517
    %v824 = vunpack.c.l.b16 %v518
    %v825 = vunpack.c.h.b16 %v518
    %v826 = vunpack.c.l.b16 %v519
    %v827 = vunpack.c.h.b16 %v519
    %v828 = vunpack.c.l.b16 %v520
    %v829 = vunpack.c.l.b16 %v521
    %v830 = vunpack.c.h.b16 %v521
    %v831 = vunpack.c.l.b16 %v522
    %v832 = vunpack.c.h.b16 %v522
    %v833 = vunpack.c.l.b16 %v523
    %v834 = vunpack.c.h.b16 %v523
    %v835 = vunpack.c.l.b16 %v524
    %v836 = vunpack.c.l.b16 %v525
    %v837 = vunpack.c.h.b16 %v525
    %v838 = vunpack.c.l.b16 %v526
    %v839 = vunpack.c.h.b16 %v526
    %v840 = vunpack.c.l.b16 %v527
    %v841 = vunpack.c.h.b16 %v527
    %v842 = vunpack.c.l.b16 %v528
    %v843 = vunpack.c.l.b16 %v529
    %v844 = vunpack.c.h.b16 %v529
    %v845 = vunpack.c.l.b16 %v530
    %v846 = vunpack.c.h.b16 %v530
    %v847 = vunpack.c.l.b16 %v531
    %v848 = vunpack.c.h.b16 %v531
    %v849 = vunpack.c.l.b16 %v532
    %v850 = vunpack.c.l.b16 %v533
    %v851 = vunpack.c.h.b16 %v533
    %v852 = vunpack.c.l.b16 %v534
    %v853 = vunpack.c.h.b16 %v534
    %v854 = vunpack.c.l.b16 %v535
    %v855 = vunpack.c.h.b16 %v535
    %v856 = vunpack.c.l.b16 %v536
    %v857 = vunpack.c.l.b16 %v537
    %v858 = vunpack.c.h.b16 %v537
    %v859 = vunpack.c.l.b16 %v538
    %v860 = vunpack.c.h.b16 %v538
    %v861 = vunpack.c.l.b16 %v539
    %v862 = vunpack.c.h.b16 %v539
    %v863 = vunpack.c.l.b16 %v540
    %v864 = vunpack.c.l.b16 %v541
    %v865 = vunpack.c.h.b16 %v541
    %v866 = vunpack.c.l.b16 %v542
    %v867 = vunpack.c.h.b16 %v542
    %v868 = vunpack.c.l.b16 %v543
    %v869 = vunpack.c.h.b16 %v543
    %v870 = vunpack.c.l.b16 %v544
    %v871 = vunpack.c.l.b16 %v545
    %v872 = vunpack.c.h.b16 %v545
    %v873 = vunpack.c.l.b16 %v546
    %v874 = vunpack.c.h.b16 %v546
    %v875 = vunpack.c.l.b16 %v547
    %v876 = vunpack.c.h.b16 %v547
    %v877 = vunpack.c.l.b16 %v548
    %v878 = vunpack.c.l.b16 %v549
    %v879 = vunpack.c.h.b16 %v549
    %v880 = vunpack.c.l.b16 %v550
    %v881 = vunpack.c.h.b16 %v550
    %v882 = vunpack.c.l.b16 %v551
    %v883 = vunpack.c.h.b16 %v551
    %v884 = vunpack.c.l.b16 %v552
    %v885 = vunpack.c.l.b16 %v553
    %v886 = vunpack.c.h.b16 %v553
    %v887 = vunpack.c.l.b16 %v554
    %v888 = vunpack.c.h.b16 %v554
    %v889 = vunpack.c.l.b16 %v555
    %v890 = vunpack.c.h.b16 %v555
    %v891 = vunpack.c.l.b16 %v556
    %v892 = vunpack.c.l.b16 %v557
    %v893 = vunpack.c.h.b16 %v557
    %v894 = vunpack.c.l.b16 %v558
    %v895 = vunpack.c.h.b16 %v558
    %v896 = vunpack.c.l.b16 %v559
    %v897 = vunpack.c.h.b16 %v559
    %v898 = vunpack.c.l.b16 %v560
    %v899 = vunpack.c.l.b16 %v561
    %v900 = vunpack.c.h.b16 %v561
    %v901 = vunpack.c.l.b16 %v562
    %v902 = vunpack.c.h.b16 %v562
    %v903 = vunpack.c.l.b16 %v563
    %v904 = vunpack.c.h.b16 %v563
    %v905 = vunpack.c.l.b16 %v564
    %v906 = vunpack.c.l.b16 %v565
    %v907 = vunpack.c.h.b16 %v565
    %v908 = vunpack.c.l.b16 %v566
    %v909 = vunpack.c.h.b16 %v566
    %v910 = vunpack.c.l.b16 %v567
    %v911 = vunpack.c.h.b16 %v567
    %v912 = vunpack.c.l.b16 %v568
    %v913 = vunpack.c.l.b16 %v569
    %v914 = vunpack.c.h.b16 %v569
    %v915 = vunpack.c.l.b16 %v570
    %v916 = vunpack.c.h.b16 %v570
    %v917 = vunpack.c.l.b16 %v571
    %v918 = vunpack.c.h.b16 %v571
    %v919 = vunpack.c.l.b16 %v572
    %v920 = vunpack.c.l.b16 %v573
    %v921 = vunpack.c.h.b16 %v573
    %v922 = vunpack.c.l.b16 %v574
    %v923 = vunpack.c.h.b16 %v574
    %v924 = vunpack.c.l.b16 %v575
    %v925 = vunpack.c.h.b16 %v575
    %v926 = vunpack.c.l.b16 %v576
    %v927 = vunpack.c.l.b16 %v577
    %v928 = vunpack.c.h.b16 %v577
    %v929 = vunpack.c.l.b16 %v578
    %v930 = vunpack.c.h.b16 %v578
    %v931 = vunpack.c.l.b16 %v579
    %v932 = vunpack.c.h.b16 %v579
    %v933 = vunpack.c.l.b16 %v580
    %v934 = vunpack.c.l.b16 %v581
    %v935 = vunpack.c.h.b16 %v581
    %v936 = vunpack.c.l.b16 %v582
    %v937 = vunpack.c.h.b16 %v582
    %v938 = vunpack.c.l.b16 %v583
    %v939 = vunpack.c.h.b16 %v583
    %v940 = vunpack.c.l.b16 %v584
    %v941 = vunpack.c.l.b16 %v585
    %v942 = vunpack.c.h.b16 %v585
    %v943 = vunpack.c.l.b16 %v586
    %v944 = vunpack.c.h.b16 %v586
    %v945 = vunpack.c.l.b16 %v587
    %v946 = vunpack.c.h.b16 %v587
    %v947 = vunpack.c.l.b16 %v588
    %v948 = vunpack.c.l.b16 %v589
    %v949 = vunpack.c.h.b16 %v589
    %v950 = vunpack.c.l.b16 %v590
    %v951 = vunpack.c.h.b16 %v590
    %v952 = vunpack.c.l.b16 %v591
    %v953 = vunpack.c.h.b16 %v591
    %v954 = vunpack.c.l.b16 %v592
    %v955 = vunpack.c.l.b16 %v593
    %v956 = vunpack.c.h.b16 %v593
    %v957 = vunpack.c.l.b16 %v594
    %v958 = vunpack.c.h.b16 %v594
    %v959 = vunpack.c.l.b16 %v595
    %v960 = vunpack.c.h.b16 %v595
    %v961 = vunpack.c.l.b16 %v596
    %v962 = vunpack.c.l.b16 %v597
    %v963 = vunpack.c.h.b16 %v597
    %v964 = vunpack.c.l.b16 %v598
    %v965 = vunpack.c.h.b16 %v598
    %v966 = vunpack.c.l.b16 %v599
    %v967 = vunpack.c.h.b16 %v599
    %v968 = vunpack.c.l.b16 %v600
    %v969 = vunpack.c.l.b16 %v601
    %v970 = vunpack.c.h.b16 %v601
    %v971 = vunpack.c.l.b16 %v602
    %v972 = vunpack.c.h.b16 %v602
    %v973 = vunpack.c.l.b16 %v603
    %v974 = vunpack.c.h.b16 %v603
    %v975 = vunpack.c.l.b16 %v604
    %v976 = vunpack.c.l.b16 %v605
    %v977 = vunpack.c.h.b16 %v605
    %v978 = vunpack.c.l.b16 %v606
    %v979 = vunpack.c.h.b16 %v606
    %v980 = vunpack.c.l.b16 %v607
    %v981 = vunpack.c.h.b16 %v607
    %v982 = vunpack.c.l.b16 %v608
    %v983 = vunpack.c.l.b16 %v609
    %v984 = vunpack.c.h.b16 %v609
    %v985 = vunpack.c.l.b16 %v610
    %v986 = vunpack.c.h.b16 %v610
    %v987 = vunpack.c.l.b16 %v611
    %v988 = vunpack.c.h.b16 %v611
    %v989 = vunpack.c.l.b16 %v612
    %v990 = vunpack.c.l.b16 %v613
    %v991 = vunpack.c.h.b16 %v613
    %v992 = vunpack.c.l.b16 %v614
    %v993 = vunpack.c.h.b16 %v614
    %v994 = vunpack.c.l.b16 %v615
    %v995 = vunpack.c.h.b16 %v615
    %v996 = vunpack.c.l.b16 %v616
    %v997 = vunpack.c.l.b16 %v617
    %v998 = vunpack.c.h.b16 %v617
    %v999 = vunpack.c.l.b16 %v618
    %v1000 = vunpack.c.h.b16 %v618
    %v1001 = vunpack.c.l.b16 %v619
    %v1002 = vunpack.c.h.b16 %v619
    %v1003 = vunpack.c.l.b16 %v620
    %v1004 = vunpack.c.l.b16 %v621
    %v1005 = vunpack.c.h.b16 %v621
    %v1006 = vunpack.c.l.b16 %v622
    %v1007 = vunpack.c.h.b16 %v622
    %v1008 = vunpack.c.l.b16 %v623
    %v1009 = vunpack.c.h.b16 %v623
    %v1010 = vunpack.c.l.b16 %v624
    %v1011 = vunpack.c.l.b16 %v625
    %v1012 = vunpack.c.h.b16 %v625
    %v1013 = vunpack.c.l.b16 %v626
    %v1014 = vunpack.c.h.b16 %v626
    %v1015 = vunpack.c.l.b16 %v627
    %v1016 = vunpack.c.h.b16 %v627
    %v1017 = vunpack.c.l.b16 %v628
    %v1018 = vpack.c.b16 %v801, %v794
    %v1019 = vpack.c.b16 %v802, %v795
    %v1020 = vpack.c.b16 %v803, %v796
    %v1021 = vpack.c.b16 %v804, %v797
    %v1022 = vpack.c.b16 %v805, %v798
    %v1023 = vpack.c.b16 %v806, %v799
    %v1024 = vpack.c.b16 %v807, %v800
    %v1025 = vpack.c.b16 %v815, %v808
    %v1026 = vpack.c.b16 %v816, %v809
    %v1027 = vpack.c.b16 %v817, %v810
    %v1028 = vpack.c.b16 %v818, %v811
    %v1029 = vpack.c.b16 %v819, %v812
    %v1030 = vpack.c.b16 %v820, %v813
    %v1031 = vpack.c.b16 %v821, %v814
    %v1032 = vpack.c.b16 %v829, %v822
    %v1033 = vpack.c.b16 %v830, %v823
    %v1034 = vpack.c.b16 %v831, %v824
    %v1035 = vpack.c.b16 %v832, %v825
    %v1036 = vpack.c.b16 %v833, %v826
    %v1037 = vpack.c.b16 %v834, %v827
    %v1038 = vpack.c.b16 %v835, %v828
    %v1039 = vpack.c.b16 %v843, %v836
    %v1040 = vpack.c.b16 %v844, %v837
    %v1041 = vpack.c.b16 %v845, %v838
    %v1042 = vpack.c.b16 %v846, %v839
    %v1043 = vpack.c.b16 %v847, %v840
    %v1044 = vpack.c.b16 %v848, %v841
    %v1045 = vpack.c.b16 %v849, %v842
    %v1046 = vpack.c.b16 %v857, %v850
    %v1047 = vpack.c.b16 %v858, %v851
    %v1048 = vpack.c.b16 %v859, %v852
    %v1049 = vpack.c.b16 %v860, %v853
    %v1050 = vpack.c.b16 %v861, %v854
    %v1051 = vpack.c.b16 %v862, %v855
    %v1052 = vpack.c.b16 %v863, %v856
    %v1053 = vpack.c.b16 %v871, %v864
    %v1054 = vpack.c.b16 %v872, %v865
    %v1055 = vpack.c.b16 %v873, %v866
    %v1056 = vpack.c.b16 %v874, %v867
    %v1057 = vpack.c.b16 %v875, %v868
    %v1058 = vpack.c.b16 %v876, %v869
    %v1059 = vpack.c.b16 %v877, %v870
    %v1060 = vpack.c.b16 %v885, %v878
    %v1061 = vpack.c.b16 %v886, %v879
    %v1062 = vpack.c.b16 %v887, %v880
    %v1063 = vpack.c.b16 %v888, %v881
    %v1064 = vpack.c.b16 %v889, %v882
    %v1065 = vpack.c.b16 %v890, %v883
    %v1066 = vpack.c.b16 %v891, %v884
    %v1067 = vpack.c.b16 %v899, %v892
    %v1068 = vpack.c.b16 %v900, %v893
    %v1069 = vpack.c.b16 %v901, %v894
    %v1070 = vpack.c.b16 %v902, %v895
    %v1071 = vpack.c.b16 %v903, %v896
    %v1072 = vpack.c.b16 %v904, %v897
    %v1073 = vpack.c.b16 %v905, %v898
    %v1074 = vpack.c.b16 %v913, %v906
    %v1075 = vpack.c.b16 %v914, %v907
    %v1076 = vpack.c.b16 %v915, %v908
    %v1077 = vpack.c.b16 %v916, %v909
    %v1078 = vpack.c.b16 %v917, %v910
    %v1079 = vpack.c.b16 %v918, %v911
    %v1080 = vpack.c.b16 %v919, %v912
    %v1081 = vpack.c.b16 %v927, %v920
    %v1082 = vpack.c.b16 %v928, %v921
    %v1083 = vpack.c.b16 %v929, %v922
    %v1084 = vpack.c.b16 %v930, %v923
    %v1085 = vpack.c.b16 %v931, %v924
    %v1086 = vpack.c.b16 %v932, %v925
    %v1087 = vpack.c.b16 %v933, %v926
    %v1088 = vpack.c.b16 %v941, %v934
    %v1089 = vpack.c.b16 %v942, %v935
    %v1090 = vpack.c.b16 %v943, %v936
    %v1091 = vpack.c.b16 %v944, %v937
    %v1092 = vpack.c.b16 %v945, %v938
    %v1093 = vpack.c.b16 %v946, %v939
    %v1094 = vpack.c.b16 %v947, %v940
    %v1095 = vpack.c.b16 %v955, %v948
    %v1096 = vpack.c.b16 %v956, %v949
    %v1097 = vpack.c.b16 %v957, %v950
    %v1098 = vpack.c.b16 %v958, %v951
    %v1099 = vpack.c.b16 %v959, %v952
    %v1100 = vpack.c.b16 %v960, %v953
    %v1101 = vpack.c.b16 %v961, %v954
    %v1102 = vpack.c.b16 %v969, %v962
    %v1103 = vpack.c.b16 %v970, %v963
    %v1104 = vpack.c.b16 %v971, %v964
    %v1105 = vpack.c.b16 %v972, %v965
    %v1106 = vpack.c.b16 %v973, %v966
    %v1107 = vpack.c.b16 %v974, %v967
    %v1108 = vpack.c.b16 %v975, %v968
    %v1109 = vpack.c.b16 %v983, %v976
    %v1110 = vpack.c.b16 %v984, %v977
    %v1111 = vpack.c.b16 %v985, %v978
    %v1112 = vpack.c.b16 %v986, %v979
    %v1113 = vpack.c.b16 %v987, %v980
    %v1114 = vpack.c.b16 %v988, %v981
    %v1115 = vpack.c.b16 %v989, %v982
    %v1116 = vpack.c.b16 %v997, %v990
    %v1117 = vpack.c.b16 %v998, %v991
    %v1118 = vpack.c.b16 %v999, %v992
    %v1119 = vpack.c.b16 %v1000, %v993
    %v1120 = vpack.c.b16 %v1001, %v994
    %v1121 = vpack.c.b16 %v1002, %v995
    %v1122 = vpack.c.b16 %v1003, %v996
    %v1123 = vpack.c.b16 %v1011, %v1004
    %v1124 = vpack.c.b16 %v1012, %v1005
    %v1125 = vpack.c.b16 %v1013, %v1006
    %v1126 = vpack.c.b16 %v1014, %v1007
    %v1127 = vpack.c.b16 %v1015, %v1008
    %v1128 = vpack.c.b16 %v1016, %v1009
    %v1129 = vpack.c.b16 %v1017, %v1010
    %1242 = vmatprep.subr.bf16.mxu0 %v1019
    %1243 = vmatpush1.bf16.msra.mxu0 %v1018
    %1244 = vmatprep.subr.bf16.mxu0 %v1026
    %1245 = vmatpush1.bf16.msra.mxu0 %v1025
    %1246 = vmatprep.subr.bf16.mxu0 %v1033
    %1247 = vmatpush1.bf16.msra.mxu0 %v1032
    %1248 = vmatprep.subr.bf16.mxu0 %v1040
    %1249 = vmatpush1.bf16.msra.mxu0 %v1039
    %1250 = vmatprep.subr.bf16.mxu0 %v1047
    %1251 = vmatpush1.bf16.msra.mxu0 %v1046
    %1252 = vmatprep.subr.bf16.mxu0 %v1054
    %1253 = vmatpush1.bf16.msra.mxu0 %v1053
    %1254 = vmatprep.subr.bf16.mxu0 %v1061
    %1255 = vmatpush1.bf16.msra.mxu0 %v1060
    %1256 = vmatprep.subr.bf16.mxu0 %v1068
    %1257 = vmatpush1.bf16.msra.mxu0 %v1067
    %1258 = vmatprep.subr.bf16.mxu0 %v1075
    %1259 = vmatpush1.bf16.msra.mxu0 %v1074
    %1260 = vmatprep.subr.bf16.mxu0 %v1082
    %1261 = vmatpush1.bf16.msra.mxu0 %v1081
    %1262 = vmatprep.subr.bf16.mxu0 %v1089
    %1263 = vmatpush1.bf16.msra.mxu0 %v1088
    %1264 = vmatprep.subr.bf16.mxu0 %v1096
    %1265 = vmatpush1.bf16.msra.mxu0 %v1095
    %1266 = vmatprep.subr.bf16.mxu0 %v1103
    %1267 = vmatpush1.bf16.msra.mxu0 %v1102
    %1268 = vmatprep.subr.bf16.mxu0 %v1110
    %1269 = vmatpush1.bf16.msra.mxu0 %v1109
    %1270 = vmatprep.subr.bf16.mxu0 %v1117
    %1271 = vmatpush1.bf16.msra.mxu0 %v1116
    %1272 = vmatprep.subr.bf16.mxu0 %v1124
    %1273 = vmatpush1.bf16.msra.mxu0 %v1123
    %1274 = vmatprep.mubr.bf16.mxu0 %v500
    %1275 = vmatmul.mubr.bf16.gmra.mrb[0].mxu0 %v499
    %v1276 = vpop.f32.mrb[0].mxu0
    %v1277 = vadd.f32 %v634, %v1276
    %v1278 = vpop.f32.mrb[0].mxu0
    %v1279 = vadd.f32 %v638, %v1278
    %v1280 = vpop.f32.mrb[0].mxu0
    %v1281 = vadd.f32 %v634, %v1280
    %v1282 = vpop.f32.mrb[0].mxu0
    %v1283 = vadd.f32 %v638, %v1282
    %1284 = vdwg.mxu0
    %1285 = vmatprep.subr.bf16.mxu0 %v1021
    %1286 = vmatpush1.bf16.msra.mxu0 %v1020
    %1287 = vmatprep.subr.bf16.mxu0 %v1028
    %1288 = vmatpush1.bf16.msra.mxu0 %v1027
    %1289 = vmatprep.subr.bf16.mxu0 %v1035
    %1290 = vmatpush1.bf16.msra.mxu0 %v1034
    %1291 = vmatprep.subr.bf16.mxu0 %v1042
    %1292 = vmatpush1.bf16.msra.mxu0 %v1041
    %1293 = vmatprep.subr.bf16.mxu0 %v1049
    %1294 = vmatpush1.bf16.msra.mxu0 %v1048
    %1295 = vmatprep.subr.bf16.mxu0 %v1056
    %1296 = vmatpush1.bf16.msra.mxu0 %v1055
    %1297 = vmatprep.subr.bf16.mxu0 %v1063
    %1298 = vmatpush1.bf16.msra.mxu0 %v1062
    %1299 = vmatprep.subr.bf16.mxu0 %v1070
    %1300 = vmatpush1.bf16.msra.mxu0 %v1069
    %1301 = vmatprep.subr.bf16.mxu0 %v1077
    %1302 = vmatpush1.bf16.msra.mxu0 %v1076
    %1303 = vmatprep.subr.bf16.mxu0 %v1084
    %1304 = vmatpush1.bf16.msra.mxu0 %v1083
    %1305 = vmatprep.subr.bf16.mxu0 %v1091
    %1306 = vmatpush1.bf16.msra.mxu0 %v1090
    %1307 = vmatprep.subr.bf16.mxu0 %v1098
    %1308 = vmatpush1.bf16.msra.mxu0 %v1097
    %1309 = vmatprep.subr.bf16.mxu0 %v1105
    %1310 = vmatpush1.bf16.msra.mxu0 %v1104
    %1311 = vmatprep.subr.bf16.mxu0 %v1112
    %1312 = vmatpush1.bf16.msra.mxu0 %v1111
    %1313 = vmatprep.subr.bf16.mxu0 %v1119
    %1314 = vmatpush1.bf16.msra.mxu0 %v1118
    %1315 = vmatprep.subr.bf16.mxu0 %v1126
    %1316 = vmatpush1.bf16.msra.mxu0 %v1125
    %1317 = vmatprep.mubr.bf16.mxu0 %v500
    %1318 = vmatmul.mubr.bf16.gmra.mrb[0].mxu0 %v499
    %v1319 = vpop.f32.mrb[0].mxu0
    %v1320 = vadd.f32 %v642, %v1319
    %v1321 = vpop.f32.mrb[0].mxu0
    %v1322 = vadd.f32 %v646, %v1321
    %v1323 = vpop.f32.mrb[0].mxu0
    %v1324 = vadd.f32 %v642, %v1323
    %v1325 = vpop.f32.mrb[0].mxu0
    %v1326 = vadd.f32 %v646, %v1325
    %1327 = vdwg.mxu0
    %1328 = vmatprep.subr.bf16.mxu0 %v1023
    %1329 = vmatpush1.bf16.msra.mxu0 %v1022
    %1330 = vmatprep.subr.bf16.mxu0 %v1030
    %1331 = vmatpush1.bf16.msra.mxu0 %v1029
    %1332 = vmatprep.subr.bf16.mxu0 %v1037
    %1333 = vmatpush1.bf16.msra.mxu0 %v1036
    %1334 = vmatprep.subr.bf16.mxu0 %v1044
    %1335 = vmatpush1.bf16.msra.mxu0 %v1043
    %1336 = vmatprep.subr.bf16.mxu0 %v1051
    %1337 = vmatpush1.bf16.msra.mxu0 %v1050
    %1338 = vmatprep.subr.bf16.mxu0 %v1058
    %1339 = vmatpush1.bf16.msra.mxu0 %v1057
    %1340 = vmatprep.subr.bf16.mxu0 %v1065
    %1341 = vmatpush1.bf16.msra.mxu0 %v1064
    %1342 = vmatprep.subr.bf16.mxu0 %v1072
    %1343 = vmatpush1.bf16.msra.mxu0 %v1071
    %1344 = vmatprep.subr.bf16.mxu0 %v1079
    %1345 = vmatpush1.bf16.msra.mxu0 %v1078
    %1346 = vmatprep.subr.bf16.mxu0 %v1086
    %1347 = vmatpush1.bf16.msra.mxu0 %v1085
    %1348 = vmatprep.subr.bf16.mxu0 %v1093
    %1349 = vmatpush1.bf16.msra.mxu0 %v1092
    %1350 = vmatprep.subr.bf16.mxu0 %v1100
    %1351 = vmatpush1.bf16.msra.mxu0 %v1099
    %1352 = vmatprep.subr.bf16.mxu0 %v1107
    %1353 = vmatpush1.bf16.msra.mxu0 %v1106
    %1354 = vmatprep.subr.bf16.mxu0 %v1114
    %1355 = vmatpush1.bf16.msra.mxu0 %v1113
    %1356 = vmatprep.subr.bf16.mxu0 %v1121
    %1357 = vmatpush1.bf16.msra.mxu0 %v1120
    %1358 = vmatprep.subr.bf16.mxu0 %v1128
    %1359 = vmatpush1.bf16.msra.mxu0 %v1127
    %1360 = vmatprep.mubr.bf16.mxu0 %v500
    %1361 = vmatmul.mubr.bf16.gmra.mrb[0].mxu0 %v499
    %v1362 = vpop.f32.mrb[0].mxu0
    %v1363 = vadd.f32 %v650, %v1362
    %v1364 = vpop.f32.mrb[0].mxu0
    %v1365 = vadd.f32 %v654, %v1364
    %v1366 = vpop.f32.mrb[0].mxu0
    %v1367 = vadd.f32 %v650, %v1366
    %v1368 = vpop.f32.mrb[0].mxu0
    %v1369 = vadd.f32 %v654, %v1368
    %1370 = vdwg.mxu0
    %1371 = vmatprep.subr.bf16.mxu0 0
    %1372 = vmatpush1.bf16.msra.mxu0 %v1024
    %1373 = vmatprep.subr.bf16.mxu0 0
    %1374 = vmatpush1.bf16.msra.mxu0 %v1031
    %1375 = vmatprep.subr.bf16.mxu0 0
    %1376 = vmatpush1.bf16.msra.mxu0 %v1038
    %1377 = vmatprep.subr.bf16.mxu0 0
    %1378 = vmatpush1.bf16.msra.mxu0 %v1045
    %1379 = vmatprep.subr.bf16.mxu0 0
    %1380 = vmatpush1.bf16.msra.mxu0 %v1052
    %1381 = vmatprep.subr.bf16.mxu0 0
    %1382 = vmatpush1.bf16.msra.mxu0 %v1059
    %1383 = vmatprep.subr.bf16.mxu0 0
    %1384 = vmatpush1.bf16.msra.mxu0 %v1066
    %1385 = vmatprep.subr.bf16.mxu0 0
    %1386 = vmatpush1.bf16.msra.mxu0 %v1073
    %1387 = vmatprep.subr.bf16.mxu0 0
    %1388 = vmatpush1.bf16.msra.mxu0 %v1080
    %1389 = vmatprep.subr.bf16.mxu0 0
    %1390 = vmatpush1.bf16.msra.mxu0 %v1087
    %1391 = vmatprep.subr.bf16.mxu0 0
    %1392 = vmatpush1.bf16.msra.mxu0 %v1094
    %1393 = vmatprep.subr.bf16.mxu0 0
    %1394 = vmatpush1.bf16.msra.mxu0 %v1101
    %1395 = vmatprep.subr.bf16.mxu0 0
    %1396 = vmatpush1.bf16.msra.mxu0 %v1108
    %1397 = vmatprep.subr.bf16.mxu0 0
    %1398 = vmatpush1.bf16.msra.mxu0 %v1115
    %1399 = vmatprep.subr.bf16.mxu0 0
    %1400 = vmatpush1.bf16.msra.mxu0 %v1122
    %1401 = vmatprep.subr.bf16.mxu0 0
    %1402 = vmatpush1.bf16.msra.mxu0 %v1129
    %1403 = vmatprep.mubr.bf16.mxu0 %v500
    %1404 = vmatmul.mubr.bf16.gmra.mrb[0].mxu0 %v499
    %v1405 = vpop.f32.mrb[0].mxu0
    %v1406 = vadd.f32 %v658, %v1405
    %v1407 = vpop.f32.mrb[0].mxu0
    %v1408 = vpop.f32.mrb[0].mxu0
    %v1409 = vadd.f32 %v658, %v1408
    %v1410 = vpop.f32.mrb[0].mxu0
    %1411 = vdwg.mxu0
    %v1412 = vtanh.pop %v1277
    %v1413 = vtanh.pop %v1279
    %v1414 = vtanh.pop %v1320
    %v1415 = vtanh.pop %v1322
    %v1416 = vtanh.pop %v1363
    %v1417 = vtanh.pop %v1365
    %v1418 = vtanh.pop %v1406
    %v1419 = vtanh.pop %v1281
    %v1420 = vtanh.pop %v1283
    %v1421 = vtanh.pop %v1324
    %v1422 = vtanh.pop %v1326
    %v1423 = vtanh.pop %v1367
    %v1424 = vtanh.pop %v1369
    %v1425 = vtanh.pop %v1409
    %1426 = vst [vmem:[#allocation10] sm:$0xff] %v1412
    %1427 = vst [vmem:[#allocation10 + $0x8] sm:$0xff] %v1413
    %1428 = vst [vmem:[#allocation10 + $0x10] sm:$0xff] %v1414
    %1429 = vst [vmem:[#allocation10 + $0x18] sm:$0xff] %v1415
    %1430 = vst [vmem:[#allocation10 + $0x20] sm:$0xff] %v1416
    %1431 = vst [vmem:[#allocation10 + $0x28] sm:$0xff] %v1417
    %1432 = vst [vmem:[#allocation10 + $0x30] sm:$0xff] %v1418
    %1433 = vst [vmem:[#allocation10 + $0x38] sm:$0xff] %v1419
    %1434 = vst [vmem:[#allocation10 + $0x40] sm:$0xff] %v1420
    %1435 = vst [vmem:[#allocation10 + $0x48] sm:$0xff] %v1421
    %1436 = vst [vmem:[#allocation10 + $0x50] sm:$0xff] %v1422
    %1437 = vst [vmem:[#allocation10 + $0x58] sm:$0xff] %v1423
    %1438 = vst [vmem:[#allocation10 + $0x60] sm:$0xff] %v1424
    %1439 = vst [vmem:[#allocation10 + $0x68] sm:$0xff] %v1425
    // Predicated region
    $region46: #{tpu_custom_call.1} parent=1 // pred_check
      _
    $region47: #{tpu_custom_call.1} parent=1 // pred_check_branch
      %1441 = sbr.rel (0) target = $region49
    $region48: #{tpu_custom_call.1} parent=1 // pred_region
      %s1443 = ssub.s32 1792, 1792
      %1444 = vsyncadd [#allocation4], %s1443
      %s1445 = sshll.u32 [#allocation10], 4
      %s1446 = int_to_ptr.vmem [resolvable:$true] %s1445
      %1451 = dma.vmem_to_hbm [thread:$0]  %s1446, 1792, %s7, [#allocation4], 896, 896, 56
    $region49: #{tpu_custom_call.1} parent=1 // pred_fallthru
      _
    // Predicated region
    $region50: #{tpu_custom_call.1} parent=1 // pred_check
      _
    $region51: #{tpu_custom_call.1} parent=1 // pred_check_branch
      %1453 = sbr.rel (0) target = $region53
    $region52: #{tpu_custom_call.1} parent=1 // pred_region
      %1454 = dma.done [#allocation4], 1792
    $region53: #{tpu_custom_call.1} parent=1 // pred_fallthru
      _
    %1455 = vsyncpa [#allocation3], 1
    %1456 = vsyncpa [#allocation6], 1
    %1457 = vsyncpa [#allocation9], 1
    %1458 = vsyncpa [#allocation4], 1

</llo_original>
